<compile_context>
chip_gen: v5e
topology: v5e:2x2
jax: 0.10.0
libtpu: 0.0.40
codegen_flags: <defaults>
</compile_context>

<pallas_src>
import functools

import jax
import jax.numpy as jnp
from jax.experimental import pallas as pl
from jax.experimental.pallas import tpu as pltpu

LN_EPS = 1e-5  # torch.nn.LayerNorm default


def _round_up(x, m):
    return ((x + m - 1) // m) * m


def _supports_pipeline_mode():
    """Static (construction-time) capability check: does this jax version accept
    pipeline_mode=pl.Buffered on BlockSpec?  No compile happens here, so genuine
    kernel/lowering errors are never masked."""
    if not hasattr(pl, "Buffered"):
        return False
    try:
        pl.BlockSpec((8, 128), lambda i: (0, 0), pipeline_mode=pl.Buffered(1))
        return True
    except TypeError:
        return False


_PIPELINE_MODE_OK = _supports_pipeline_mode()


def _tpu_vmem_limit_bytes():
    """Generation-aware scoped-VMEM cap: per-core capacity minus >=16 MiB headroom
    for compiler-internal scratch.  v7x: 64 MiB/TC -> 48 MiB; v5e/v6e: 128 MiB ->
    96 MiB.  Only the hardware-info query is guarded; kernel errors are not."""
    try:
        cap = int(pltpu.get_tpu_info().vmem_capacity_bytes)
    except Exception:
        cap = 64 * 1024 * 1024  # conservative fallback = v7x per-TC capacity
    return max(32 * 1024 * 1024, min(cap - 16 * 1024 * 1024, 96 * 1024 * 1024))


def _tagging_head_kernel(
    x_ref,        # (TM, IN)        bf16 or f32
    w1_ref,       # (IN, D1)        bf16 or f32
    b1_ref,       # (1, D1)         f32
    w2_ref,       # (D1, D2)        bf16 or f32
    b2_ref,       # (1, D2)         f32
    g_ref,        # (1, D2)         f32  LayerNorm weight
    beta_ref,     # (1, D2)         f32  LayerNorm bias
    wo_ref,       # (D2, Cp)        bf16 or f32
    bo_ref,       # (1, Cp)         f32
    out_ref,      # (TM, Cp)        f32
):
    w_dtype = w1_ref.dtype
    x = x_ref[...]

    # ----- hidden layer 0: Linear -> (Dropout=Id) -> Tanh --------------------
    # MXU matmul with f32 accumulation; tanh rides the (otherwise free) EUP slot.
    h1 = jnp.dot(x, w1_ref[...], preferred_element_type=jnp.float32) + b1_ref[...]
    h1 = jnp.tanh(h1)

    # ----- hidden layer 1: Linear -> (Dropout=Id) -> LayerNorm -> ReLU -------
    h2 = (
        jnp.dot(h1.astype(w_dtype), w2_ref[...], preferred_element_type=jnp.float32)
        + b2_ref[...]
    )
    # Fused LayerNorm statistics: var = E[x^2] - E[x]^2 (two independent
    # cross-lane reduces instead of two dependent ones); clamp guards roundoff.
    mean = jnp.mean(h2, axis=-1, keepdims=True)
    mean_sq = jnp.mean(h2 * h2, axis=-1, keepdims=True)
    var = jnp.maximum(mean_sq - mean * mean, 0.0)
    h2 = (h2 - mean) * jax.lax.rsqrt(var + LN_EPS) * g_ref[...] + beta_ref[...]
    h2 = jnp.maximum(h2, 0.0)

    # ----- out_proj: Linear ---------------------------------------------------
    out_ref[...] = (
        jnp.dot(h2.astype(w_dtype), wo_ref[...], preferred_element_type=jnp.float32)
        + bo_ref[...]
    )


def _select_tile_rows(N, IN, D1, D2, C_pad, x_itemsize, w_itemsize,
                      tile_rows, row_align, vmem_limit):
    """Pick a row-tile size that (a) fits the per-generation VMEM budget and
    (b) is balanced across grid steps so ragged N pads by < row_align rows."""
    weight_bufs = 1 if _PIPELINE_MODE_OK else 2
    resident = weight_bufs * (IN * D1 + D1 * D2 + D2 * C_pad) * w_itemsize
    resident += weight_bufs * (D1 + 3 * D2 + C_pad) * 4       # biases + LN params
    budget = int(vmem_limit * 0.85) - resident                 # pipeline bookkeeping slack
    # per-row bytes: x double buffer + out double buffer + f32 h1/h2 intermediates
    per_row = 2 * IN * x_itemsize + 2 * C_pad * 4 + 2 * (D1 + D2) * 4
    if budget > 0:
        tm_max = max(row_align, (budget // per_row // row_align) * row_align)
    else:
        tm_max = row_align

    target = max(row_align, min(tile_rows, tm_max))
    n_steps = max(1, pl.cdiv(N, target))
    tm = _round_up(pl.cdiv(N, n_steps), row_align)              # balanced over grid steps
    return min(tm, tm_max, _round_up(N, row_align))


@functools.partial(jax.jit, static_argnames=("tile_rows", "use_bf16"))
def _forward_impl(features, params, tile_rows, use_bf16):
    B, T, IN = features.shape
    w1, b1, w2, b2, g, beta, wo, bo = params
    D1 = w1.shape[1]
    D2 = w2.shape[1]
    C = wo.shape[1]
    N = B * T

    # ----- lane-dense logits: pad num_classes to a multiple of 128 -----------
    C_pad = _round_up(C, 128)
    if C_pad != C:
        wo = jnp.pad(wo, ((0, 0), (0, C_pad - C)))
        bo = jnp.pad(bo, ((0, 0), (0, C_pad - C)))

    x2d = features.reshape(N, IN)
    if use_bf16:
        # bf16 matmul operands on all generations (v5e/v6e/v7x MXUs are
        # bf16-native); f32 accumulation + f32 bias/LayerNorm math stay inside
        # the kernel.  In an end-to-end graph this cast fuses with the upstream
        # producer; callers can also pass bf16 features directly to skip it.
        x2d = x2d.astype(jnp.bfloat16)
        w1 = w1.astype(jnp.bfloat16)
        w2 = w2.astype(jnp.bfloat16)
        wo = wo.astype(jnp.bfloat16)

    row_align = 16 if x2d.dtype == jnp.bfloat16 else 8  # fully packed sublane tiles
    vmem_limit = _tpu_vmem_limit_bytes()
    tm = _select_tile_rows(N, IN, D1, D2, C_pad, x2d.dtype.itemsize,
                           w1.dtype.itemsize, tile_rows, row_align, vmem_limit)
    grid = (pl.cdiv(N, tm),)
    # No wrapper-side padding of x2d: Pallas clips the DMAs of the ragged last
    # row block.  Out-of-range rows contain garbage, but every op is row-wise
    # independent (LayerNorm reduces along the feature axis only) and those
    # rows are never written back, so results are unaffected.  Do NOT "fix"
    # this into a masked path.

    row_spec = pl.BlockSpec((tm, IN), lambda i: (i, 0))
    out_spec = pl.BlockSpec((tm, C_pad), lambda i: (i, 0))

    def const_spec(shape):
        # Constant index_map -> same block every grid step (no re-DMA).  Single
        # buffer it when supported so VMEM isn't spent on a second, never
        # refilled pipeline buffer.
        if _PIPELINE_MODE_OK:
            return pl.BlockSpec(shape, lambda i: (0, 0), pipeline_mode=pl.Buffered(1))
        return pl.BlockSpec(shape, lambda i: (0, 0))

    logits2d = pl.pallas_call(
        _tagging_head_kernel,
        out_shape=jax.ShapeDtypeStruct((N, C_pad), jnp.float32),
        grid_spec=pltpu.PrefetchScalarGridSpec(
            num_scalar_prefetch=0,
            grid=grid,
            in_specs=[
                row_spec,
                const_spec((IN, D1)), const_spec((1, D1)),
                const_spec((D1, D2)), const_spec((1, D2)),
                const_spec((1, D2)), const_spec((1, D2)),
                const_spec((D2, C_pad)), const_spec((1, C_pad)),
            ],
            out_specs=out_spec,
        ),
        compiler_params=pltpu.CompilerParams(
            # TODO(synk): on v7x (2 TensorCores) verify "parallel" shards this
            # row axis across both cores; otherwise switch to pltpu.CORE_PARALLEL.
            dimension_semantics=("parallel",),
            vmem_limit_bytes=vmem_limit,
        ),
    )(x2d, w1, b1, w2, b2, g, beta, wo, bo)

    if C_pad != C:
        logits2d = logits2d[:, :C]
    return logits2d.reshape(B, T, C)


def tagging_head_forward(features, params, *, tile_rows=512, use_bf16=True):
    """features: [B, T, input_dim] -> logits [B, T, num_classes].

    use_bf16=True (default) feeds bf16 operands to the MXU (f32 accumulation);
    expect bf16-level agreement (~1e-2) with an f32 reference.  Set
    use_bf16=False for bitwise-close f32 matmuls.
    """
    return _forward_impl(features, params, tile_rows, use_bf16)


def init_params(key, input_dim, d1, d2, num_classes):
    """Deterministic synthetic parameters (kernel layout: weights are [in, out])."""
    ks = jax.random.split(key, 6)
    w1 = jax.random.normal(ks[0], (input_dim, d1), jnp.float32) * 0.05
    b1 = jax.random.normal(ks[1], (1, d1), jnp.float32) * 0.01
    w2 = jax.random.normal(ks[2], (d1, d2), jnp.float32) * 0.05
    b2 = jax.random.normal(ks[3], (1, d2), jnp.float32) * 0.01
    g = jnp.ones((1, d2), jnp.float32)       # LayerNorm weight init
    beta = jnp.zeros((1, d2), jnp.float32)   # LayerNorm bias init
    wo = jax.random.normal(ks[4], (d2, num_classes), jnp.float32) * 0.05
    bo = jax.random.normal(ks[5], (1, num_classes), jnp.float32) * 0.01
    return (w1, b1, w2, b2, g, beta, wo, bo)


def reference_forward(features, params):
    """Pure-JAX reference mirroring the PyTorch forward (eval mode)."""
    w1, b1, w2, b2, g, beta, wo, bo = params
    h = features @ w1 + b1
    h = jnp.tanh(h)
    h = h @ w2 + b2
    mean = jnp.mean(h, axis=-1, keepdims=True)
    var = jnp.mean((h - mean) ** 2, axis=-1, keepdims=True)
    h = (h - mean) * jax.lax.rsqrt(var + LN_EPS) * g + beta
    h = jnp.maximum(h, 0.0)
    return h @ wo + bo


if __name__ == "__main__":
    # Small shapes: batch=2, seq=8, input_dim=32, linear_layers_dim=[64, 48],
    # num_classes=8, activation_fns=['tanh','relu'], normalisation=['layer'],
    # pooler_dropout=[0.0, 0.0] (eval mode -> identity).
    B, T, IN = 2, 8, 32
    D1, D2, C = 64, 48, 8

    key = jax.random.PRNGKey(0)
    k_feat, k_par = jax.random.split(key)
    features = jax.random.normal(k_feat, (B, T, IN), jnp.float32)
    params = init_params(k_par, IN, D1, D2, C)

    ref = reference_forward(features, params)

    # Default path: bf16 matmul operands, f32 accumulation -> bf16-level tolerance.
    logits = jax.block_until_ready(tagging_head_forward(features, params))
    assert logits.shape == (B, T, C)
    assert jnp.allclose(logits, ref, atol=5e-2, rtol=5e-2), "bf16 path mismatch vs reference"

    # f32 path matches the f32 reference tightly.
    logits_f32 = jax.block_until_ready(
        tagging_head_forward(features, params, use_bf16=False)
    )
    assert jnp.allclose(logits_f32, ref, atol=1e-4, rtol=1e-4), "f32 path mismatch vs reference"

    print("KERNEL_OK")
</pallas_src>

<mosaic_0001>
module attributes {stable_mosaic.version = 11 : i64} {
  func.func @_tagging_head_kernel(%arg0: i32, %arg1: memref<16x32xbf16, #tpu.memory_space<vmem>>, %arg2: memref<32x64xbf16, #tpu.memory_space<vmem>>, %arg3: memref<1x64xf32, #tpu.memory_space<vmem>>, %arg4: memref<64x48xbf16, #tpu.memory_space<vmem>>, %arg5: memref<1x48xf32, #tpu.memory_space<vmem>>, %arg6: memref<1x48xf32, #tpu.memory_space<vmem>>, %arg7: memref<1x48xf32, #tpu.memory_space<vmem>>, %arg8: memref<48x128xbf16, #tpu.memory_space<vmem>>, %arg9: memref<1x128xf32, #tpu.memory_space<vmem>>, %arg10: memref<16x128xf32, #tpu.memory_space<vmem>>) attributes {dimension_semantics = [#tpu.dimension_semantics<parallel>], iteration_bounds = array<i64: 1>, scalar_prefetch = 0 : i64, scratch_operands = 0 : i64, tpu.core_type = #tpu.core_type<tc>, window_params = [{transform_indices = @transform_0, window_bounds = array<i64: 16, 32>}, {pipeline_mode = #tpu.pipeline_mode<synchronous>, transform_indices = @transform_1, window_bounds = array<i64: 32, 64>}, {pipeline_mode = #tpu.pipeline_mode<synchronous>, transform_indices = @transform_2, window_bounds = array<i64: 1, 64>}, {pipeline_mode = #tpu.pipeline_mode<synchronous>, transform_indices = @transform_3, window_bounds = array<i64: 64, 48>}, {pipeline_mode = #tpu.pipeline_mode<synchronous>, transform_indices = @transform_4, window_bounds = array<i64: 1, 48>}, {pipeline_mode = #tpu.pipeline_mode<synchronous>, transform_indices = @transform_5, window_bounds = array<i64: 1, 48>}, {pipeline_mode = #tpu.pipeline_mode<synchronous>, transform_indices = @transform_6, window_bounds = array<i64: 1, 48>}, {pipeline_mode = #tpu.pipeline_mode<synchronous>, transform_indices = @transform_7, window_bounds = array<i64: 48, 128>}, {pipeline_mode = #tpu.pipeline_mode<synchronous>, transform_indices = @transform_8, window_bounds = array<i64: 1, 128>}, {transform_indices = @transform_9, window_bounds = array<i64: 16, 128>}]} {
    %c0 = arith.constant 0 : index
    %c0_0 = arith.constant 0 : index
    %0 = vector.load %arg1[%c0, %c0_0] : memref<16x32xbf16, #tpu.memory_space<vmem>>, vector<16x32xbf16>
    %c0_1 = arith.constant 0 : index
    %c0_2 = arith.constant 0 : index
    %1 = vector.load %arg2[%c0_1, %c0_2] : memref<32x64xbf16, #tpu.memory_space<vmem>>, vector<32x64xbf16>
    %cst = arith.constant dense<0.000000e+00> : vector<16x64xf32>
    %2 = tpu.matmul %0, %1, %cst {dimension_numbers = #tpu.dot_dimension_numbers<[1], [0], [0], [1], [0, 0, 1, 1], [], []>} : vector<16x32xbf16>, vector<32x64xbf16>, vector<16x64xf32> -> vector<16x64xf32>
    %c0_3 = arith.constant 0 : index
    %c0_4 = arith.constant 0 : index
    %3 = vector.load %arg3[%c0_3, %c0_4] : memref<1x64xf32, #tpu.memory_space<vmem>>, vector<1x64xf32>
    %4 = vector.broadcast %3 : vector<1x64xf32> to vector<16x64xf32>
    %5 = arith.addf %2, %4 : vector<16x64xf32>
    %6 = math.tanh %5 : vector<16x64xf32>
    %7 = arith.truncf %6 : vector<16x64xf32> to vector<16x64xbf16>
    %c0_5 = arith.constant 0 : index
    %c0_6 = arith.constant 0 : index
    %8 = vector.load %arg4[%c0_5, %c0_6] : memref<64x48xbf16, #tpu.memory_space<vmem>>, vector<64x48xbf16>
    %cst_7 = arith.constant dense<0.000000e+00> : vector<16x48xf32>
    %9 = tpu.matmul %7, %8, %cst_7 {dimension_numbers = #tpu.dot_dimension_numbers<[1], [0], [0], [1], [0, 0, 1, 1], [], []>} : vector<16x64xbf16>, vector<64x48xbf16>, vector<16x48xf32> -> vector<16x48xf32>
    %c0_8 = arith.constant 0 : index
    %c0_9 = arith.constant 0 : index
    %10 = vector.load %arg5[%c0_8, %c0_9] : memref<1x48xf32, #tpu.memory_space<vmem>>, vector<1x48xf32>
    %11 = vector.broadcast %10 : vector<1x48xf32> to vector<16x48xf32>
    %12 = arith.addf %9, %11 : vector<16x48xf32>
    %cst_10 = arith.constant dense<0.000000e+00> : vector<16xf32>
    %13 = vector.multi_reduction <add>, %12, %cst_10 [1] : vector<16x48xf32> to vector<16xf32>
    %14 = vector.shape_cast %13 : vector<16xf32> to vector<16x1xf32>
    %cst_11 = arith.constant 4.800000e+01 : f32
    %15 = vector.broadcast %cst_11 : f32 to vector<16x1xf32>
    %16 = arith.divf %14, %15 : vector<16x1xf32>
    %17 = arith.mulf %12, %12 : vector<16x48xf32>
    %cst_12 = arith.constant dense<0.000000e+00> : vector<16xf32>
    %18 = vector.multi_reduction <add>, %17, %cst_12 [1] : vector<16x48xf32> to vector<16xf32>
    %19 = vector.shape_cast %18 : vector<16xf32> to vector<16x1xf32>
    %cst_13 = arith.constant 4.800000e+01 : f32
    %20 = vector.broadcast %cst_13 : f32 to vector<16x1xf32>
    %21 = arith.divf %19, %20 : vector<16x1xf32>
    %22 = arith.mulf %16, %16 : vector<16x1xf32>
    %23 = arith.subf %21, %22 : vector<16x1xf32>
    %cst_14 = arith.constant 0.000000e+00 : f32
    %24 = vector.broadcast %cst_14 : f32 to vector<16x1xf32>
    %25 = arith.maximumf %23, %24 : vector<16x1xf32>
    %26 = vector.broadcast %16 : vector<16x1xf32> to vector<16x48xf32>
    %27 = arith.subf %12, %26 : vector<16x48xf32>
    %cst_15 = arith.constant 9.99999974E-6 : f32
    %28 = vector.broadcast %cst_15 : f32 to vector<16x1xf32>
    %29 = arith.addf %25, %28 : vector<16x1xf32>
    %30 = math.rsqrt %29 : vector<16x1xf32>
    %31 = vector.broadcast %30 : vector<16x1xf32> to vector<16x48xf32>
    %32 = arith.mulf %27, %31 : vector<16x48xf32>
    %c0_16 = arith.constant 0 : index
    %c0_17 = arith.constant 0 : index
    %33 = vector.load %arg6[%c0_16, %c0_17] : memref<1x48xf32, #tpu.memory_space<vmem>>, vector<1x48xf32>
    %34 = vector.broadcast %33 : vector<1x48xf32> to vector<16x48xf32>
    %35 = arith.mulf %32, %34 : vector<16x48xf32>
    %c0_18 = arith.constant 0 : index
    %c0_19 = arith.constant 0 : index
    %36 = vector.load %arg7[%c0_18, %c0_19] : memref<1x48xf32, #tpu.memory_space<vmem>>, vector<1x48xf32>
    %37 = vector.broadcast %36 : vector<1x48xf32> to vector<16x48xf32>
    %38 = arith.addf %35, %37 : vector<16x48xf32>
    %cst_20 = arith.constant 0.000000e+00 : f32
    %39 = vector.broadcast %cst_20 : f32 to vector<16x48xf32>
    %40 = arith.maximumf %38, %39 : vector<16x48xf32>
    %41 = arith.truncf %40 : vector<16x48xf32> to vector<16x48xbf16>
    %c0_21 = arith.constant 0 : index
    %c0_22 = arith.constant 0 : index
    %42 = vector.load %arg8[%c0_21, %c0_22] : memref<48x128xbf16, #tpu.memory_space<vmem>>, vector<48x128xbf16>
    %cst_23 = arith.constant dense<0.000000e+00> : vector<16x128xf32>
    %43 = tpu.matmul %41, %42, %cst_23 {dimension_numbers = #tpu.dot_dimension_numbers<[1], [0], [0], [1], [0, 0, 1, 1], [], []>} : vector<16x48xbf16>, vector<48x128xbf16>, vector<16x128xf32> -> vector<16x128xf32>
    %c0_24 = arith.constant 0 : index
    %c0_25 = arith.constant 0 : index
    %44 = vector.load %arg9[%c0_24, %c0_25] : memref<1x128xf32, #tpu.memory_space<vmem>>, vector<1x128xf32>
    %45 = vector.broadcast %44 : vector<1x128xf32> to vector<16x128xf32>
    %46 = arith.addf %43, %45 : vector<16x128xf32>
    %c0_26 = arith.constant 0 : index
    %c0_27 = arith.constant 0 : index
    %47 = vector.load %arg10[%c0_26, %c0_27] : memref<16x128xf32, #tpu.memory_space<vmem>>, vector<16x128xf32>
    tpu.vector_store %arg10[%c0_26, %c0_27], %46 {strides = array<i32>} : memref<16x128xf32, #tpu.memory_space<vmem>>, vector<16x128xf32>,
    return
  }
  func.func @transform_0(%arg0: i32) -> (i32, i32) {
    %c0_i32 = arith.constant 0 : i32
    %c0_i32_0 = arith.constant 0 : i32
    return %arg0, %c0_i32 : i32, i32
  }
  func.func @transform_1(%arg0: i32) -> (i32, i32) {
    %c0_i32 = arith.constant 0 : i32
    %c0_i32_0 = arith.constant 0 : i32
    %c0_i32_1 = arith.constant 0 : i32
    return %c0_i32, %c0_i32_0 : i32, i32
  }
  func.func @transform_2(%arg0: i32) -> (i32, i32) {
    %c0_i32 = arith.constant 0 : i32
    %c0_i32_0 = arith.constant 0 : i32
    %c0_i32_1 = arith.constant 0 : i32
    return %c0_i32, %c0_i32_0 : i32, i32
  }
  func.func @transform_3(%arg0: i32) -> (i32, i32) {
    %c0_i32 = arith.constant 0 : i32
    %c0_i32_0 = arith.constant 0 : i32
    %c0_i32_1 = arith.constant 0 : i32
    return %c0_i32, %c0_i32_0 : i32, i32
  }
  func.func @transform_4(%arg0: i32) -> (i32, i32) {
    %c0_i32 = arith.constant 0 : i32
    %c0_i32_0 = arith.constant 0 : i32
    %c0_i32_1 = arith.constant 0 : i32
    return %c0_i32, %c0_i32_0 : i32, i32
  }
  func.func @transform_5(%arg0: i32) -> (i32, i32) {
    %c0_i32 = arith.constant 0 : i32
    %c0_i32_0 = arith.constant 0 : i32
    %c0_i32_1 = arith.constant 0 : i32
    return %c0_i32, %c0_i32_0 : i32, i32
  }
  func.func @transform_6(%arg0: i32) -> (i32, i32) {
    %c0_i32 = arith.constant 0 : i32
    %c0_i32_0 = arith.constant 0 : i32
    %c0_i32_1 = arith.constant 0 : i32
    return %c0_i32, %c0_i32_0 : i32, i32
  }
  func.func @transform_7(%arg0: i32) -> (i32, i32) {
    %c0_i32 = arith.constant 0 : i32
    %c0_i32_0 = arith.constant 0 : i32
    %c0_i32_1 = arith.constant 0 : i32
    return %c0_i32, %c0_i32_0 : i32, i32
  }
  func.func @transform_8(%arg0: i32) -> (i32, i32) {
    %c0_i32 = arith.constant 0 : i32
    %c0_i32_0 = arith.constant 0 : i32
    %c0_i32_1 = arith.constant 0 : i32
    return %c0_i32, %c0_i32_0 : i32, i32
  }
  func.func @transform_9(%arg0: i32) -> (i32, i32) {
    %c0_i32 = arith.constant 0 : i32
    %c0_i32_0 = arith.constant 0 : i32
    return %arg0, %c0_i32 : i32, i32
  }
}

</mosaic_0001>

<llo_original>
// kernel: _forward_impl.1
$region0: #{_forward_impl.1}
  #allocation0 [shape = 'u32[]', space=smem, size = 0x4, offset = 0x4, fixed_abs, tag = 'smem constant byte address 0x4 - core index']
  #allocation1 [shape = 'u32[72,128]{1,0:T(1,128)}', space=vmem, size = 0x9000, scoped, tag = 'internal scratch']
  %s0 = inlined_call_operand.vmem [shape: bf16[16,32], index: 0, kind: input, shape index: {}]
  %s1 = inlined_call_operand.vmem [shape: bf16[32,64], index: 1, kind: input, shape index: {}]
  %s2 = inlined_call_operand.vmem [shape: f32[1,64], index: 2, kind: input, shape index: {}]
  %s3 = inlined_call_operand.vmem [shape: bf16[64,48], index: 3, kind: input, shape index: {}]
  %s4 = inlined_call_operand.vmem [shape: f32[1,48], index: 4, kind: input, shape index: {}]
  %s5 = inlined_call_operand.vmem [shape: f32[1,48], index: 5, kind: input, shape index: {}]
  %s6 = inlined_call_operand.vmem [shape: f32[1,48], index: 6, kind: input, shape index: {}]
  %s7 = inlined_call_operand.vmem [shape: bf16[48,128], index: 7, kind: input, shape index: {}]
  %s8 = inlined_call_operand.vmem [shape: f32[1,128], index: 8, kind: input, shape index: {}]
  %s9 = inlined_call_operand.vmem [shape: f32[16,128], index: 9, kind: output, shape index: {}]
  %s10 = sld [smem:[#allocation0]]
  $region46: #{_forward_impl.1} parent=0
    _
  %s12 = ssub.s32 1, %s10
  %s13 = scalar_select 0, %s12, %s10
  // Predicated region
  $region2: #{_forward_impl.1} parent=0 // pred_check
    _
  $region3: #{_forward_impl.1} parent=0 // pred_check_branch
    %15 = sbr.rel (0) target = $region5
  $region4: #{_forward_impl.1} parent=0 // pred_region
    _
  $region5: #{_forward_impl.1} parent=0 // pred_fallthru
    _
  // Predicated region
  $region6: #{_forward_impl.1} parent=0 // pred_check
    _
  $region7: #{_forward_impl.1} parent=0 // pred_check_branch
    %17 = sbr.rel (0) target = $region9
  $region8: #{_forward_impl.1} parent=0 // pred_region
    _
  $region9: #{_forward_impl.1} parent=0 // pred_fallthru
    _
  // Predicated region
  $region10: #{_forward_impl.1} parent=0 // pred_check
    _
  $region11: #{_forward_impl.1} parent=0 // pred_check_branch
    %19 = sbr.rel (0) target = $region13
  $region12: #{_forward_impl.1} parent=0 // pred_region
    _
  $region13: #{_forward_impl.1} parent=0 // pred_fallthru
    _
  // Predicated region
  $region14: #{_forward_impl.1} parent=0 // pred_check
    _
  $region15: #{_forward_impl.1} parent=0 // pred_check_branch
    %21 = sbr.rel (0) target = $region17
  $region16: #{_forward_impl.1} parent=0 // pred_region
    _
  $region17: #{_forward_impl.1} parent=0 // pred_fallthru
    _
  // Predicated region
  $region18: #{_forward_impl.1} parent=0 // pred_check
    _
  $region19: #{_forward_impl.1} parent=0 // pred_check_branch
    %23 = sbr.rel (0) target = $region21
  $region20: #{_forward_impl.1} parent=0 // pred_region
    _
  $region21: #{_forward_impl.1} parent=0 // pred_fallthru
    _
  // Predicated region
  $region22: #{_forward_impl.1} parent=0 // pred_check
    _
  $region23: #{_forward_impl.1} parent=0 // pred_check_branch
    %25 = sbr.rel (0) target = $region25
  $region24: #{_forward_impl.1} parent=0 // pred_region
    _
  $region25: #{_forward_impl.1} parent=0 // pred_fallthru
    _
  // Predicated region
  $region26: #{_forward_impl.1} parent=0 // pred_check
    _
  $region27: #{_forward_impl.1} parent=0 // pred_check_branch
    %27 = sbr.rel (0) target = $region29
  $region28: #{_forward_impl.1} parent=0 // pred_region
    _
  $region29: #{_forward_impl.1} parent=0 // pred_fallthru
    _
  // Predicated region
  $region30: #{_forward_impl.1} parent=0 // pred_check
    _
  $region31: #{_forward_impl.1} parent=0 // pred_check_branch
    %29 = sbr.rel (0) target = $region33
  $region32: #{_forward_impl.1} parent=0 // pred_region
    _
  $region33: #{_forward_impl.1} parent=0 // pred_fallthru
    _
  // Predicated region
  $region34: #{_forward_impl.1} parent=0 // pred_check
    _
  $region35: #{_forward_impl.1} parent=0 // pred_check_branch
    %31 = sbr.rel (0) target = $region37
  $region36: #{_forward_impl.1} parent=0 // pred_region
    _
  $region37: #{_forward_impl.1} parent=0 // pred_fallthru
    _
  %v33 = vld [vmem:[%s0] sm:$0xf]
  %v34 = vld [vmem:[%s0 + $0x4] sm:$0xf]
  %v35 = vld [vmem:[%s1] sm:$0xf]
  %v36 = vld [vmem:[%s1 + $0x4] sm:$0xf]
  %v37 = vld [vmem:[%s1 + $0x8] sm:$0xf]
  %v38 = vld [vmem:[%s1 + $0xc] sm:$0xf]
  %v39 = vld [vmem:[%s2] sm:$0x1]
  %v41 = vperm.slane %v39, 0
  %v45 = vunpack.c.l.b16 %v33
  %v46 = vunpack.c.l.b16 %v34
  %v47 = vpack.c.b16 %v46, %v45
  %v52 = vunpack.c.l.b16 %v35
  %v53 = vunpack.c.l.b16 %v36
  %v54 = vunpack.c.l.b16 %v37
  %v55 = vunpack.c.l.b16 %v38
  %v56 = vpack.c.b16 %v53, %v52
  %v57 = vpack.c.b16 %v55, %v54
  %vm60 = vcmask 261120
  %v62 = vsel %vm60, %v47, 0
  %64 = vmatpush.bf16.msra.mxu0 0
  %65 = vmatpush.bf16.msra.mxu0 0
  %66 = vmatpush.bf16.msra.mxu0 0
  %67 = vmatpush.bf16.msra.mxu0 0
  %68 = vmatpush.bf16.msra.mxu0 0
  %69 = vmatpush.bf16.msra.mxu0 0
  %70 = vmatpush.bf16.msra.mxu0 %v57
  %71 = vmatpush.bf16.msra.mxu0 %v56
  %72 = vmatmul.bf16.gmra.mxu0 %v62
  %v73 = vpop.f32.mrf.mxu0
  %v74 = vadd.f32 %v41, %v73
  %v75 = vpop.f32.mrf.mxu0
  %v76 = vadd.f32 %v41, %v75
  %77 = vdwg.mxu0
  %v78 = vtanh.pop %v74
  %v79 = vtanh.pop %v76
  %v80 = vpack.c.bf16 %v79, %v78
  %v81 = vld [vmem:[%s3] sm:$0xf]
  %v82 = vld [vmem:[%s3 + $0x4] sm:$0xf]
  %v83 = vld [vmem:[%s3 + $0x8] sm:$0xf]
  %v84 = vld [vmem:[%s3 + $0xc] sm:$0xf]
  %v85 = vld [vmem:[%s3 + $0x10] sm:$0xf]
  %v86 = vld [vmem:[%s3 + $0x14] sm:$0xf]
  %v87 = vld [vmem:[%s3 + $0x18] sm:$0xf]
  %v88 = vld [vmem:[%s3 + $0x1c] sm:$0xf]
  %v89 = vld [vmem:[%s4] sm:$0x1]
  %v91 = vperm.slane %v89, 0
  %v101 = vunpack.c.l.b16 %v81
  %v102 = vunpack.c.l.b16 %v82
  %v103 = vunpack.c.l.b16 %v83
  %v104 = vunpack.c.l.b16 %v84
  %v105 = vunpack.c.l.b16 %v85
  %v106 = vunpack.c.l.b16 %v86
  %v107 = vunpack.c.l.b16 %v87
  %v108 = vunpack.c.l.b16 %v88
  %v109 = vpack.c.b16 %v102, %v101
  %v110 = vpack.c.b16 %v104, %v103
  %v111 = vpack.c.b16 %v106, %v105
  %v112 = vpack.c.b16 %v108, %v107
  %vm117 = vcmask 523264
  %v119 = vsel %vm117, %v80, 0
  %121 = vmatpush.bf16.msra.mxu0 0
  %122 = vmatpush.bf16.msra.mxu0 0
  %123 = vmatpush.bf16.msra.mxu0 0
  %124 = vmatpush.bf16.msra.mxu0 0
  %125 = vmatpush.bf16.msra.mxu0 %v112
  %126 = vmatpush.bf16.msra.mxu0 %v111
  %127 = vmatpush.bf16.msra.mxu0 %v110
  %128 = vmatpush.bf16.msra.mxu0 %v109
  %129 = vmatmul.bf16.gmra.mxu0 %v119
  %v130 = vpop.f32.mrf.mxu0
  %v131 = vadd.f32 %v91, %v130
  %v132 = vpop.f32.mrf.mxu0
  %v133 = vadd.f32 %v91, %v132
  %134 = vdwg.mxu0
  %vm135 = vcmask 392192
  %v136 = vsel %vm135, %v131, 0.0
  %137 = vadd.xlane.f32.xlu0 %v136
  %v138 = vpop.xlane.xlu0 %137
  %v139 = vsel %vm135, %v133, 0.0
  %140 = vadd.xlane.f32.xlu0 %v139
  %v141 = vpop.xlane.xlu0 %140
  %v142 = vrcp.pop 48.0
  %v143 = vmul.f32 48.0, %v142
  %v144 = vsub.f32 1.0, %v143
  %v145 = vmul.f32 %v142, %v144
  %v146 = vadd.f32 %v142, %v145
  %vm147 = vweird.f32 %v142
  %v148 = vsel %vm147, %v142, %v146
  %v149 = vmul.f32 %v138, %v148
  %v150 = vmul.f32 %v141, %v148
  %v151 = vmul.f32 %v131, %v131
  %v152 = vmul.f32 %v133, %v133
  %v153 = vsel %vm135, %v151, 0.0
  %154 = vadd.xlane.f32.xlu0 %v153
  %v155 = vpop.xlane.xlu0 %154
  %v156 = vsel %vm135, %v152, 0.0
  %157 = vadd.xlane.f32.xlu0 %v156
  %v158 = vpop.xlane.xlu0 %157
  %v159 = vmul.f32 %v155, %v148
  %v160 = vmul.f32 %v158, %v148
  %v161 = vmul.f32 %v149, %v149
  %v162 = vmul.f32 %v150, %v150
  %v163 = vsub.f32 %v159, %v161
  %v164 = vsub.f32 %v160, %v162
  %v165 = vmax.f32 %v163, 0.0
  %v166 = vmax.f32 %v164, 0.0
  %v167 = vsub.f32 %v131, %v149
  %v168 = vsub.f32 %v133, %v150
  %v169 = vadd.f32 %v165, 1e-05
  %v170 = vadd.f32 %v166, 1e-05
  %v171 = vrsqrt.pop %v169
  %v172 = vmul.f32 %v171, %v169
  %v173 = vmul.f32 %v172, %v171
  %v174 = vmul.f32 0.5, %v173
  %v175 = vsub.f32 1.5, %v174
  %v176 = vmul.f32 %v171, %v175
  %vm177 = vweird.f32 %v169
  %vm178 = vweird.f32 %v171
  %vm179 = vmor %vm177, %vm178
  %v180 = vsel %vm179, %v171, %v176
  %v181 = vrsqrt.pop %v170
  %v182 = vmul.f32 %v181, %v170
  %v183 = vmul.f32 %v182, %v181
  %v184 = vmul.f32 0.5, %v183
  %v185 = vsub.f32 1.5, %v184
  %v186 = vmul.f32 %v181, %v185
  %vm187 = vweird.f32 %v170
  %vm188 = vweird.f32 %v181
  %vm189 = vmor %vm187, %vm188
  %v190 = vsel %vm189, %v181, %v186
  %v191 = vmul.f32 %v167, %v180
  %v192 = vmul.f32 %v168, %v190
  %v193 = vld [vmem:[%s5] sm:$0x1]
  %v195 = vperm.slane %v193, 0
  %v197 = vmul.f32 %v191, %v195
  %v198 = vmul.f32 %v192, %v195
  %v199 = vld [vmem:[%s6] sm:$0x1]
  %v201 = vperm.slane %v199, 0
  %v203 = vadd.f32 %v197, %v201
  %v204 = vadd.f32 %v198, %v201
  %v205 = vmax.f32 %v203, 0.0
  %v206 = vmax.f32 %v204, 0.0
  %v207 = vpack.c.bf16 %v206, %v205
  %v208 = vld [vmem:[%s7] sm:$0xf]
  %v209 = vld [vmem:[%s7 + $0x4] sm:$0xf]
  %v210 = vld [vmem:[%s7 + $0x8] sm:$0xf]
  %v211 = vld [vmem:[%s7 + $0xc] sm:$0xf]
  %v212 = vld [vmem:[%s7 + $0x10] sm:$0xf]
  %v213 = vld [vmem:[%s7 + $0x14] sm:$0xf]
  %v214 = vld [vmem:[%s8] sm:$0x1]
  %v216 = vperm.slane %v214, 0
  %v224 = vunpack.c.l.b16 %v208
  %v225 = vunpack.c.l.b16 %v209
  %v226 = vunpack.c.l.b16 %v210
  %v227 = vunpack.c.l.b16 %v211
  %v228 = vunpack.c.l.b16 %v212
  %v229 = vunpack.c.l.b16 %v213
  %v230 = vpack.c.b16 %v225, %v224
  %v231 = vpack.c.b16 %v227, %v226
  %v232 = vpack.c.b16 %v229, %v228
  %v237 = vsel %vm135, %v207, 0
  %239 = vmatpush.bf16.msra.mxu0 0
  %240 = vmatpush.bf16.msra.mxu0 0
  %241 = vmatpush.bf16.msra.mxu0 0
  %242 = vmatpush.bf16.msra.mxu0 0
  %243 = vmatpush.bf16.msra.mxu0 0
  %244 = vmatpush.bf16.msra.mxu0 %v232
  %245 = vmatpush.bf16.msra.mxu0 %v231
  %246 = vmatpush.bf16.msra.mxu0 %v230
  %247 = vmatmul.bf16.gmra.mxu0 %v237
  %v248 = vpop.f32.mrf.mxu0
  %v249 = vadd.f32 %v216, %v248
  %v250 = vpop.f32.mrf.mxu0
  %v251 = vadd.f32 %v216, %v250
  %252 = vdwg.mxu0
  %253 = vst [vmem:[%s9] sm:$0xff] %v249
  %254 = vst [vmem:[%s9 + $0x8] sm:$0xff] %v251
  // Predicated region
  $region38: #{_forward_impl.1} parent=0 // pred_check
    _
  $region39: #{_forward_impl.1} parent=0 // pred_check_branch
    %256 = sbr.rel (0) target = $region41
  $region40: #{_forward_impl.1} parent=0 // pred_region
    _
  $region41: #{_forward_impl.1} parent=0 // pred_fallthru
    _
  // Predicated region
  $region42: #{_forward_impl.1} parent=0 // pred_check
    _
  $region43: #{_forward_impl.1} parent=0 // pred_check_branch
    %258 = sbr.rel (0) target = $region45
  $region44: #{_forward_impl.1} parent=0 // pred_region
    _
  $region45: #{_forward_impl.1} parent=0 // pred_fallthru
    _

</llo_original>
